<compile_context>
chip_gen: v7x
topology: tpu7x:2x2x1
jax: 0.10.0
libtpu: 0.0.40
codegen_flags: <defaults>
</compile_context>

<pallas_src>
import functools

import jax
import jax.numpy as jnp
from jax import lax
from jax.experimental import pallas as pl
from jax.experimental.pallas import tpu as pltpu


def _round_up(x, m):
    return (x + m - 1) // m * m


def _trigram_kernel(ids_sref, m_ref, b1_ref, w2_ref, b2_ref, out_ref, h_ref,
                    *, context_size, vocab_size, tile_b):
    # ids_sref : (C, B_pad) int32 in SMEM (scalar prefetch)
    # m_ref    : (C*V, H_pad) f32   folded emb @ W1, VMEM-resident
    # b1_ref   : (1, H_pad) f32
    # w2_ref   : (H_pad, V_pad) f32 VMEM-resident
    # b2_ref   : (1, V_pad) f32
    # out_ref  : (TB, V_pad) f32    current batch tile of log-probs
    # h_ref    : (TB, H_pad) f32    VMEM scratch for gathered pre-activations
    base = pl.program_id(0) * tile_b
    bias_row = b1_ref[...]                                    # (1, H_pad), hoisted

    def gather_row(b, carry):
        row = bias_row
        for c in range(context_size):                         # static, tiny (C == 2)
            tok = ids_sref[c, base + b]                        # scalar read from SMEM
            row = row + m_ref[pl.ds(c * vocab_size + tok, 1), :]   # dynamic row gather
        h_ref[pl.ds(b, 1), :] = row
        return carry

    lax.fori_loop(0, tile_b, gather_row, 0, unroll=(tile_b <= 16))

    hidden = jnp.tanh(h_ref[...])                              # (TB, H_pad)
    logits = jnp.dot(hidden, w2_ref[...],
                     preferred_element_type=jnp.float32) + b2_ref[...]   # (TB, V_pad)

    v_pad = out_ref.shape[-1]
    if vocab_size < v_pad:                                     # mask padded vocab columns
        col = lax.broadcasted_iota(jnp.int32, logits.shape, 1)
        logits = jnp.where(col < vocab_size, logits, -1e30)

    # numerically stable log_softmax over the vocab axis (dim=1 in PyTorch)
    m = jnp.max(logits, axis=1, keepdims=True)
    z = logits - m
    lse = jnp.log(jnp.sum(jnp.exp(z), axis=1, keepdims=True))
    out_ref[...] = z - lse


def trigram_forward(ids, emb, w1, b1, w2, b2):
    """Forward pass matching TrigramModel.forward.

    ids : (B, C) int32 token ids      (C = context_size)
    emb : (V, E)  embedding table
    w1  : (C*E, H) linear1 weight (transposed vs. PyTorch's (H, C*E))
    b1  : (H,)
    w2  : (H, V)  linear2 weight (transposed vs. PyTorch's (V, H))
    b2  : (V,)
    returns (B, V) log-probabilities.
    """
    B, C = ids.shape
    V, E = emb.shape
    H = w1.shape[1]
    assert w1.shape[0] == C * E

    H_pad = _round_up(H, 128)
    V_pad = _round_up(V, 128)
    TB = 128 if B >= 128 else _round_up(B, 8)
    B_pad = _round_up(B, TB)

    # Fold the embedding table into linear1 (once, in the wrapper):
    #   M[c] = emb @ W1[c*E:(c+1)*E]   -> first layer becomes a row gather.
    M = jnp.einsum('ve,ceh->cvh', emb, w1.reshape(C, E, H),
                   precision=lax.Precision.HIGHEST)            # (C, V, H)
    M = jnp.pad(M, ((0, 0), (0, 0), (0, H_pad - H))).reshape(C * V, H_pad)

    b1_p = jnp.pad(b1.reshape(1, H), ((0, 0), (0, H_pad - H)))
    w2_p = jnp.pad(w2, ((0, H_pad - H), (0, V_pad - V)))
    b2_p = jnp.pad(b2.reshape(1, V), ((0, 0), (0, V_pad - V)))

    # ids context-major so the long (batch) axis is last in SMEM; pad batch to tile.
    ids_t = jnp.pad(ids.T.astype(jnp.int32), ((0, 0), (0, B_pad - B)))   # (C, B_pad)

    kernel = functools.partial(_trigram_kernel, context_size=C,
                               vocab_size=V, tile_b=TB)

    out = pl.pallas_call(
        kernel,
        out_shape=jax.ShapeDtypeStruct((B_pad, V_pad), jnp.float32),
        grid_spec=pltpu.PrefetchScalarGridSpec(
            num_scalar_prefetch=1,                       # ids -> SMEM
            grid=(B_pad // TB,),
            in_specs=[
                # constant index_maps -> weights stay VMEM-resident across the grid
                pl.BlockSpec((C * V, H_pad), lambda i, ids_ref: (0, 0)),   # folded emb@W1
                pl.BlockSpec((1, H_pad), lambda i, ids_ref: (0, 0)),       # b1
                pl.BlockSpec((H_pad, V_pad), lambda i, ids_ref: (0, 0)),   # W2
                pl.BlockSpec((1, V_pad), lambda i, ids_ref: (0, 0)),       # b2
            ],
            out_specs=pl.BlockSpec((TB, V_pad), lambda i, ids_ref: (i, 0)),
            scratch_shapes=[pltpu.VMEM((TB, H_pad), jnp.float32)],
        ),
        compiler_params=pltpu.CompilerParams(
            dimension_semantics=("parallel",),           # batch tiles independent (2 TCs on v7x)
            vmem_limit_bytes=32 * 1024 * 1024,
        ),
    )(ids_t, M, b1_p, w2_p, b2_p)

    return out[:B, :V]


def ref_forward(ids, emb, w1, b1, w2, b2):
    x = emb[ids].reshape(ids.shape[0], -1)
    h = jnp.tanh(jnp.dot(x, w1, precision=lax.Precision.HIGHEST) + b1)
    logits = jnp.dot(h, w2, precision=lax.Precision.HIGHEST) + b2
    return jax.nn.log_softmax(logits, axis=1)


if __name__ == "__main__":
    # small, trigram-consistent shapes
    vocab_size = 64
    embedding_dim = 16
    context_size = 2         # trigram -> 2 context words
    hidden = 32
    batch = 8

    key = jax.random.PRNGKey(0)
    k_ids, k_emb, k_w1, k_b1, k_w2, k_b2 = jax.random.split(key, 6)

    ids = jax.random.randint(k_ids, (batch, context_size), 0, vocab_size, dtype=jnp.int32)

    # deterministic synthetic parameters (shapes per nn.Module __init__)
    emb = jax.random.normal(k_emb, (vocab_size, embedding_dim), dtype=jnp.float32)
    w1 = jax.random.uniform(k_w1, (context_size * embedding_dim, hidden),
                            minval=-0.1, maxval=0.1, dtype=jnp.float32)
    b1 = jax.random.uniform(k_b1, (hidden,), minval=-0.1, maxval=0.1, dtype=jnp.float32)
    w2 = jax.random.uniform(k_w2, (hidden, vocab_size),
                            minval=-0.1, maxval=0.1, dtype=jnp.float32)
    b2 = jax.random.uniform(k_b2, (vocab_size,), minval=-0.1, maxval=0.1, dtype=jnp.float32)

    log_probs = trigram_forward(ids, emb, w1, b1, w2, b2)
    jax.block_until_ready(log_probs)

    expected = ref_forward(ids, emb, w1, b1, w2, b2)
    assert log_probs.shape == (batch, vocab_size)
    assert jnp.allclose(log_probs, expected, atol=1e-5, rtol=1e-5), "mismatch vs JAX reference"

    print("KERNEL_OK")
</pallas_src>

<mosaic_0001>
module attributes {stable_mosaic.version = 11 : i64} {
  func.func @_trigram_kernel(%arg0: i32, %arg1: memref<2x8xi32, #tpu.memory_space<smem>>, %arg2: memref<128x128xf32, #tpu.memory_space<vmem>>, %arg3: memref<1x128xf32, #tpu.memory_space<vmem>>, %arg4: memref<128x128xf32, #tpu.memory_space<vmem>>, %arg5: memref<1x128xf32, #tpu.memory_space<vmem>>, %arg6: memref<8x128xf32, #tpu.memory_space<vmem>>, %arg7: memref<8x128xf32, #tpu.memory_space<vmem>>) attributes {dimension_semantics = [#tpu.dimension_semantics<parallel>], iteration_bounds = array<i64: 1>, scalar_prefetch = 1 : i64, scratch_operands = 1 : i64, tpu.core_type = #tpu.core_type<tc>, window_params = [{pipeline_mode = #tpu.pipeline_mode<synchronous>, transform_indices = @transform_0, window_bounds = array<i64: 128, 128>}, {pipeline_mode = #tpu.pipeline_mode<synchronous>, transform_indices = @transform_1, window_bounds = array<i64: 1, 128>}, {pipeline_mode = #tpu.pipeline_mode<synchronous>, transform_indices = @transform_2, window_bounds = array<i64: 128, 128>}, {pipeline_mode = #tpu.pipeline_mode<synchronous>, transform_indices = @transform_3, window_bounds = array<i64: 1, 128>}, {transform_indices = @transform_4, window_bounds = array<i64: 8, 128>}]} {
    %c8_i32 = arith.constant 8 : i32
    %0 = arith.muli %arg0, %c8_i32 : i32
    %c0 = arith.constant 0 : index
    %c0_0 = arith.constant 0 : index
    %1 = vector.load %arg3[%c0, %c0_0] : memref<1x128xf32, #tpu.memory_space<vmem>>, vector<1x128xf32>
    %c0_i32 = arith.constant 0 : i32
    %2 = arith.addi %0, %c0_i32 : i32
    %c0_1 = arith.constant 0 : index
    %3 = arith.index_cast %2 : i32 to index
    %4 = memref.load %arg1[%c0_1, %3] : memref<2x8xi32, #tpu.memory_space<smem>>
    %c0_i32_2 = arith.constant 0 : i32
    %5 = arith.addi %c0_i32_2, %4 : i32
    %6 = arith.index_cast %5 : i32 to index
    %c0_3 = arith.constant 0 : index
    %7 = vector.load %arg2[%6, %c0_3] : memref<128x128xf32, #tpu.memory_space<vmem>>, vector<1x128xf32>
    %8 = arith.addf %1, %7 : vector<1x128xf32>
    %9 = arith.addi %0, %c0_i32 : i32
    %c1 = arith.constant 1 : index
    %10 = arith.index_cast %9 : i32 to index
    %11 = memref.load %arg1[%c1, %10] : memref<2x8xi32, #tpu.memory_space<smem>>
    %c64_i32 = arith.constant 64 : i32
    %12 = arith.addi %c64_i32, %11 : i32
    %13 = arith.index_cast %12 : i32 to index
    %c0_4 = arith.constant 0 : index
    %14 = vector.load %arg2[%13, %c0_4] : memref<128x128xf32, #tpu.memory_space<vmem>>, vector<1x128xf32>
    %15 = arith.addf %8, %14 : vector<1x128xf32>
    %16 = arith.index_cast %c0_i32 : i32 to index
    %c0_5 = arith.constant 0 : index
    %17 = vector.load %arg7[%16, %c0_5] : memref<8x128xf32, #tpu.memory_space<vmem>>, vector<1x128xf32>
    tpu.vector_store %arg7[%16, %c0_5], %15 {strides = array<i32>} : memref<8x128xf32, #tpu.memory_space<vmem>>, vector<1x128xf32>,
    %c1_i32 = arith.constant 1 : i32
    %18 = arith.addi %0, %c1_i32 : i32
    %c0_6 = arith.constant 0 : index
    %19 = arith.index_cast %18 : i32 to index
    %20 = memref.load %arg1[%c0_6, %19] : memref<2x8xi32, #tpu.memory_space<smem>>
    %c0_i32_7 = arith.constant 0 : i32
    %21 = arith.addi %c0_i32_7, %20 : i32
    %22 = arith.index_cast %21 : i32 to index
    %c0_8 = arith.constant 0 : index
    %23 = vector.load %arg2[%22, %c0_8] : memref<128x128xf32, #tpu.memory_space<vmem>>, vector<1x128xf32>
    %24 = arith.addf %1, %23 : vector<1x128xf32>
    %25 = arith.addi %0, %c1_i32 : i32
    %c1_9 = arith.constant 1 : index
    %26 = arith.index_cast %25 : i32 to index
    %27 = memref.load %arg1[%c1_9, %26] : memref<2x8xi32, #tpu.memory_space<smem>>
    %c64_i32_10 = arith.constant 64 : i32
    %28 = arith.addi %c64_i32_10, %27 : i32
    %29 = arith.index_cast %28 : i32 to index
    %c0_11 = arith.constant 0 : index
    %30 = vector.load %arg2[%29, %c0_11] : memref<128x128xf32, #tpu.memory_space<vmem>>, vector<1x128xf32>
    %31 = arith.addf %24, %30 : vector<1x128xf32>
    %32 = arith.index_cast %c1_i32 : i32 to index
    %c0_12 = arith.constant 0 : index
    %33 = vector.load %arg7[%32, %c0_12] : memref<8x128xf32, #tpu.memory_space<vmem>>, vector<1x128xf32>
    tpu.vector_store %arg7[%32, %c0_12], %31 {strides = array<i32>} : memref<8x128xf32, #tpu.memory_space<vmem>>, vector<1x128xf32>,
    %c2_i32 = arith.constant 2 : i32
    %34 = arith.addi %0, %c2_i32 : i32
    %c0_13 = arith.constant 0 : index
    %35 = arith.index_cast %34 : i32 to index
    %36 = memref.load %arg1[%c0_13, %35] : memref<2x8xi32, #tpu.memory_space<smem>>
    %c0_i32_14 = arith.constant 0 : i32
    %37 = arith.addi %c0_i32_14, %36 : i32
    %38 = arith.index_cast %37 : i32 to index
    %c0_15 = arith.constant 0 : index
    %39 = vector.load %arg2[%38, %c0_15] : memref<128x128xf32, #tpu.memory_space<vmem>>, vector<1x128xf32>
    %40 = arith.addf %1, %39 : vector<1x128xf32>
    %41 = arith.addi %0, %c2_i32 : i32
    %c1_16 = arith.constant 1 : index
    %42 = arith.index_cast %41 : i32 to index
    %43 = memref.load %arg1[%c1_16, %42] : memref<2x8xi32, #tpu.memory_space<smem>>
    %c64_i32_17 = arith.constant 64 : i32
    %44 = arith.addi %c64_i32_17, %43 : i32
    %45 = arith.index_cast %44 : i32 to index
    %c0_18 = arith.constant 0 : index
    %46 = vector.load %arg2[%45, %c0_18] : memref<128x128xf32, #tpu.memory_space<vmem>>, vector<1x128xf32>
    %47 = arith.addf %40, %46 : vector<1x128xf32>
    %48 = arith.index_cast %c2_i32 : i32 to index
    %c0_19 = arith.constant 0 : index
    %49 = vector.load %arg7[%48, %c0_19] : memref<8x128xf32, #tpu.memory_space<vmem>>, vector<1x128xf32>
    tpu.vector_store %arg7[%48, %c0_19], %47 {strides = array<i32>} : memref<8x128xf32, #tpu.memory_space<vmem>>, vector<1x128xf32>,
    %c3_i32 = arith.constant 3 : i32
    %50 = arith.addi %0, %c3_i32 : i32
    %c0_20 = arith.constant 0 : index
    %51 = arith.index_cast %50 : i32 to index
    %52 = memref.load %arg1[%c0_20, %51] : memref<2x8xi32, #tpu.memory_space<smem>>
    %c0_i32_21 = arith.constant 0 : i32
    %53 = arith.addi %c0_i32_21, %52 : i32
    %54 = arith.index_cast %53 : i32 to index
    %c0_22 = arith.constant 0 : index
    %55 = vector.load %arg2[%54, %c0_22] : memref<128x128xf32, #tpu.memory_space<vmem>>, vector<1x128xf32>
    %56 = arith.addf %1, %55 : vector<1x128xf32>
    %57 = arith.addi %0, %c3_i32 : i32
    %c1_23 = arith.constant 1 : index
    %58 = arith.index_cast %57 : i32 to index
    %59 = memref.load %arg1[%c1_23, %58] : memref<2x8xi32, #tpu.memory_space<smem>>
    %c64_i32_24 = arith.constant 64 : i32
    %60 = arith.addi %c64_i32_24, %59 : i32
    %61 = arith.index_cast %60 : i32 to index
    %c0_25 = arith.constant 0 : index
    %62 = vector.load %arg2[%61, %c0_25] : memref<128x128xf32, #tpu.memory_space<vmem>>, vector<1x128xf32>
    %63 = arith.addf %56, %62 : vector<1x128xf32>
    %64 = arith.index_cast %c3_i32 : i32 to index
    %c0_26 = arith.constant 0 : index
    %65 = vector.load %arg7[%64, %c0_26] : memref<8x128xf32, #tpu.memory_space<vmem>>, vector<1x128xf32>
    tpu.vector_store %arg7[%64, %c0_26], %63 {strides = array<i32>} : memref<8x128xf32, #tpu.memory_space<vmem>>, vector<1x128xf32>,
    %c4_i32 = arith.constant 4 : i32
    %66 = arith.addi %0, %c4_i32 : i32
    %c0_27 = arith.constant 0 : index
    %67 = arith.index_cast %66 : i32 to index
    %68 = memref.load %arg1[%c0_27, %67] : memref<2x8xi32, #tpu.memory_space<smem>>
    %c0_i32_28 = arith.constant 0 : i32
    %69 = arith.addi %c0_i32_28, %68 : i32
    %70 = arith.index_cast %69 : i32 to index
    %c0_29 = arith.constant 0 : index
    %71 = vector.load %arg2[%70, %c0_29] : memref<128x128xf32, #tpu.memory_space<vmem>>, vector<1x128xf32>
    %72 = arith.addf %1, %71 : vector<1x128xf32>
    %73 = arith.addi %0, %c4_i32 : i32
    %c1_30 = arith.constant 1 : index
    %74 = arith.index_cast %73 : i32 to index
    %75 = memref.load %arg1[%c1_30, %74] : memref<2x8xi32, #tpu.memory_space<smem>>
    %c64_i32_31 = arith.constant 64 : i32
    %76 = arith.addi %c64_i32_31, %75 : i32
    %77 = arith.index_cast %76 : i32 to index
    %c0_32 = arith.constant 0 : index
    %78 = vector.load %arg2[%77, %c0_32] : memref<128x128xf32, #tpu.memory_space<vmem>>, vector<1x128xf32>
    %79 = arith.addf %72, %78 : vector<1x128xf32>
    %80 = arith.index_cast %c4_i32 : i32 to index
    %c0_33 = arith.constant 0 : index
    %81 = vector.load %arg7[%80, %c0_33] : memref<8x128xf32, #tpu.memory_space<vmem>>, vector<1x128xf32>
    tpu.vector_store %arg7[%80, %c0_33], %79 {strides = array<i32>} : memref<8x128xf32, #tpu.memory_space<vmem>>, vector<1x128xf32>,
    %c5_i32 = arith.constant 5 : i32
    %82 = arith.addi %0, %c5_i32 : i32
    %c0_34 = arith.constant 0 : index
    %83 = arith.index_cast %82 : i32 to index
    %84 = memref.load %arg1[%c0_34, %83] : memref<2x8xi32, #tpu.memory_space<smem>>
    %c0_i32_35 = arith.constant 0 : i32
    %85 = arith.addi %c0_i32_35, %84 : i32
    %86 = arith.index_cast %85 : i32 to index
    %c0_36 = arith.constant 0 : index
    %87 = vector.load %arg2[%86, %c0_36] : memref<128x128xf32, #tpu.memory_space<vmem>>, vector<1x128xf32>
    %88 = arith.addf %1, %87 : vector<1x128xf32>
    %89 = arith.addi %0, %c5_i32 : i32
    %c1_37 = arith.constant 1 : index
    %90 = arith.index_cast %89 : i32 to index
    %91 = memref.load %arg1[%c1_37, %90] : memref<2x8xi32, #tpu.memory_space<smem>>
    %c64_i32_38 = arith.constant 64 : i32
    %92 = arith.addi %c64_i32_38, %91 : i32
    %93 = arith.index_cast %92 : i32 to index
    %c0_39 = arith.constant 0 : index
    %94 = vector.load %arg2[%93, %c0_39] : memref<128x128xf32, #tpu.memory_space<vmem>>, vector<1x128xf32>
    %95 = arith.addf %88, %94 : vector<1x128xf32>
    %96 = arith.index_cast %c5_i32 : i32 to index
    %c0_40 = arith.constant 0 : index
    %97 = vector.load %arg7[%96, %c0_40] : memref<8x128xf32, #tpu.memory_space<vmem>>, vector<1x128xf32>
    tpu.vector_store %arg7[%96, %c0_40], %95 {strides = array<i32>} : memref<8x128xf32, #tpu.memory_space<vmem>>, vector<1x128xf32>,
    %c6_i32 = arith.constant 6 : i32
    %98 = arith.addi %0, %c6_i32 : i32
    %c0_41 = arith.constant 0 : index
    %99 = arith.index_cast %98 : i32 to index
    %100 = memref.load %arg1[%c0_41, %99] : memref<2x8xi32, #tpu.memory_space<smem>>
    %c0_i32_42 = arith.constant 0 : i32
    %101 = arith.addi %c0_i32_42, %100 : i32
    %102 = arith.index_cast %101 : i32 to index
    %c0_43 = arith.constant 0 : index
    %103 = vector.load %arg2[%102, %c0_43] : memref<128x128xf32, #tpu.memory_space<vmem>>, vector<1x128xf32>
    %104 = arith.addf %1, %103 : vector<1x128xf32>
    %105 = arith.addi %0, %c6_i32 : i32
    %c1_44 = arith.constant 1 : index
    %106 = arith.index_cast %105 : i32 to index
    %107 = memref.load %arg1[%c1_44, %106] : memref<2x8xi32, #tpu.memory_space<smem>>
    %c64_i32_45 = arith.constant 64 : i32
    %108 = arith.addi %c64_i32_45, %107 : i32
    %109 = arith.index_cast %108 : i32 to index
    %c0_46 = arith.constant 0 : index
    %110 = vector.load %arg2[%109, %c0_46] : memref<128x128xf32, #tpu.memory_space<vmem>>, vector<1x128xf32>
    %111 = arith.addf %104, %110 : vector<1x128xf32>
    %112 = arith.index_cast %c6_i32 : i32 to index
    %c0_47 = arith.constant 0 : index
    %113 = vector.load %arg7[%112, %c0_47] : memref<8x128xf32, #tpu.memory_space<vmem>>, vector<1x128xf32>
    tpu.vector_store %arg7[%112, %c0_47], %111 {strides = array<i32>} : memref<8x128xf32, #tpu.memory_space<vmem>>, vector<1x128xf32>,
    %c7_i32 = arith.constant 7 : i32
    %114 = arith.addi %0, %c7_i32 : i32
    %c0_48 = arith.constant 0 : index
    %115 = arith.index_cast %114 : i32 to index
    %116 = memref.load %arg1[%c0_48, %115] : memref<2x8xi32, #tpu.memory_space<smem>>
    %c0_i32_49 = arith.constant 0 : i32
    %117 = arith.addi %c0_i32_49, %116 : i32
    %118 = arith.index_cast %117 : i32 to index
    %c0_50 = arith.constant 0 : index
    %119 = vector.load %arg2[%118, %c0_50] : memref<128x128xf32, #tpu.memory_space<vmem>>, vector<1x128xf32>
    %120 = arith.addf %1, %119 : vector<1x128xf32>
    %121 = arith.addi %0, %c7_i32 : i32
    %c1_51 = arith.constant 1 : index
    %122 = arith.index_cast %121 : i32 to index
    %123 = memref.load %arg1[%c1_51, %122] : memref<2x8xi32, #tpu.memory_space<smem>>
    %c64_i32_52 = arith.constant 64 : i32
    %124 = arith.addi %c64_i32_52, %123 : i32
    %125 = arith.index_cast %124 : i32 to index
    %c0_53 = arith.constant 0 : index
    %126 = vector.load %arg2[%125, %c0_53] : memref<128x128xf32, #tpu.memory_space<vmem>>, vector<1x128xf32>
    %127 = arith.addf %120, %126 : vector<1x128xf32>
    %128 = arith.index_cast %c7_i32 : i32 to index
    %c0_54 = arith.constant 0 : index
    %129 = vector.load %arg7[%128, %c0_54] : memref<8x128xf32, #tpu.memory_space<vmem>>, vector<1x128xf32>
    tpu.vector_store %arg7[%128, %c0_54], %127 {strides = array<i32>} : memref<8x128xf32, #tpu.memory_space<vmem>>, vector<1x128xf32>,
    %c8_i32_55 = arith.constant 8 : i32
    %c0_56 = arith.constant 0 : index
    %c0_57 = arith.constant 0 : index
    %130 = vector.load %arg7[%c0_56, %c0_57] : memref<8x128xf32, #tpu.memory_space<vmem>>, vector<8x128xf32>
    %131 = math.tanh %130 : vector<8x128xf32>
    %c0_58 = arith.constant 0 : index
    %c0_59 = arith.constant 0 : index
    %132 = vector.load %arg4[%c0_58, %c0_59] : memref<128x128xf32, #tpu.memory_space<vmem>>, vector<128x128xf32>
    %cst = arith.constant dense<0.000000e+00> : vector<8x128xf32>
    %133 = tpu.matmul %131, %132, %cst {dimension_numbers = #tpu.dot_dimension_numbers<[1], [0], [0], [1], [0, 0, 1, 1], [], []>} : vector<8x128xf32>, vector<128x128xf32>, vector<8x128xf32> -> vector<8x128xf32>
    %c0_60 = arith.constant 0 : index
    %c0_61 = arith.constant 0 : index
    %134 = vector.load %arg5[%c0_60, %c0_61] : memref<1x128xf32, #tpu.memory_space<vmem>>, vector<1x128xf32>
    %135 = vector.broadcast %134 : vector<1x128xf32> to vector<8x128xf32>
    %136 = arith.addf %133, %135 : vector<8x128xf32>
    %137 = tpu.iota {dimensions = array<i32: 1>} : vector<8x128xi32>
    %c64_i32_62 = arith.constant 64 : i32
    %138 = vector.broadcast %c64_i32_62 : i32 to vector<8x128xi32>
    %139 = arith.cmpi slt, %137, %138 : vector<8x128xi32>
    %cst_63 = arith.constant -1.000000e+30 : f32
    %140 = vector.broadcast %cst_63 : f32 to vector<8x128xf32>
    %141 = arith.select %139, %136, %140 : vector<8x128xi1>, vector<8x128xf32>
    %cst_64 = arith.constant dense<0xFF800000> : vector<8xf32>
    %142 = vector.multi_reduction <maximumf>, %141, %cst_64 [1] : vector<8x128xf32> to vector<8xf32>
    %143 = vector.shape_cast %142 : vector<8xf32> to vector<8x1xf32>
    %144 = vector.broadcast %143 : vector<8x1xf32> to vector<8x128xf32>
    %145 = arith.subf %141, %144 : vector<8x128xf32>
    %146 = math.exp %145 : vector<8x128xf32>
    %cst_65 = arith.constant dense<0.000000e+00> : vector<8xf32>
    %147 = vector.multi_reduction <add>, %146, %cst_65 [1] : vector<8x128xf32> to vector<8xf32>
    %148 = vector.shape_cast %147 : vector<8xf32> to vector<8x1xf32>
    %149 = math.log %148 : vector<8x1xf32>
    %150 = vector.broadcast %149 : vector<8x1xf32> to vector<8x128xf32>
    %151 = arith.subf %145, %150 : vector<8x128xf32>
    %c0_66 = arith.constant 0 : index
    %c0_67 = arith.constant 0 : index
    %152 = vector.load %arg6[%c0_66, %c0_67] : memref<8x128xf32, #tpu.memory_space<vmem>>, vector<8x128xf32>
    tpu.vector_store %arg6[%c0_66, %c0_67], %151 {strides = array<i32>} : memref<8x128xf32, #tpu.memory_space<vmem>>, vector<8x128xf32>,
    return
  }
  func.func @transform_0(%arg0: i32, %arg1: memref<2x8xi32, #tpu.memory_space<smem>>) -> (i32, i32) {
    %c0_i32 = arith.constant 0 : i32
    %c0_i32_0 = arith.constant 0 : i32
    %c0_i32_1 = arith.constant 0 : i32
    return %c0_i32, %c0_i32_0 : i32, i32
  }
  func.func @transform_1(%arg0: i32, %arg1: memref<2x8xi32, #tpu.memory_space<smem>>) -> (i32, i32) {
    %c0_i32 = arith.constant 0 : i32
    %c0_i32_0 = arith.constant 0 : i32
    %c0_i32_1 = arith.constant 0 : i32
    return %c0_i32, %c0_i32_0 : i32, i32
  }
  func.func @transform_2(%arg0: i32, %arg1: memref<2x8xi32, #tpu.memory_space<smem>>) -> (i32, i32) {
    %c0_i32 = arith.constant 0 : i32
    %c0_i32_0 = arith.constant 0 : i32
    %c0_i32_1 = arith.constant 0 : i32
    return %c0_i32, %c0_i32_0 : i32, i32
  }
  func.func @transform_3(%arg0: i32, %arg1: memref<2x8xi32, #tpu.memory_space<smem>>) -> (i32, i32) {
    %c0_i32 = arith.constant 0 : i32
    %c0_i32_0 = arith.constant 0 : i32
    %c0_i32_1 = arith.constant 0 : i32
    return %c0_i32, %c0_i32_0 : i32, i32
  }
  func.func @transform_4(%arg0: i32, %arg1: memref<2x8xi32, #tpu.memory_space<smem>>) -> (i32, i32) {
    %c0_i32 = arith.constant 0 : i32
    %c0_i32_0 = arith.constant 0 : i32
    return %arg0, %c0_i32 : i32, i32
  }
}

</mosaic_0001>

<llo_original>
// kernel: tpu_custom_call.1
$region0: #{tpu_custom_call.1}
  #allocation0 [shape = 'u32[]', space=smem, size = 0x4, offset = 0x4, fixed_abs, tag = 'smem constant byte address 0x4 - core index']
  #allocation1 [shape = 'u32[144,128]{1,0:T(1,128)}', space=vmem, size = 0x12000, scoped, tag = 'internal scratch']
  #allocation2 [shape = 'f32[8,128]{1,0:T(8,128)}', space=vmem, size = 0x1000, scoped, tag = 'scratch operand']
  #allocation3 [shape = 's32[1]{0}', space=sflag, size = 0x4, scoped, tag = 'scoped memory for tpu_custom_call.1']
  #allocation4 [shape = 'u8[1024]{0}', space=smem, size = 0x400, scoped, tag = 'prefetched SMEM operand 0']
  %s0 = inlined_call_operand.hbm [shape: s32[2,8], index: 0, kind: input, shape index: {}]
  %s1 = inlined_call_operand.hbm [shape: f32[128,128], index: 1, kind: input, shape index: {}]
  %s2 = inlined_call_operand.vmem [shape: f32[1,128], index: 2, kind: input, shape index: {}]
  %s3 = inlined_call_operand.hbm [shape: f32[128,128], index: 3, kind: input, shape index: {}]
  %s4 = inlined_call_operand.vmem [shape: f32[1,128], index: 4, kind: input, shape index: {}]
  %s5 = inlined_call_operand.hbm [shape: f32[8,128], index: 5, kind: output, shape index: {}]
  %s6 = sld [smem:[#allocation0]]
  $region34: #{tpu_custom_call.1} parent=0
    _
  %s8 = ssub.s32 1, %s6
  %s9 = scalar_select 0, %s8, %s6
  %11 = dma.hbm_to_smem %s0, 32, [#allocation4], [#allocation3]
  %12 = dma.done [#allocation3], 32
  %13 = sfence
  $region1: #{tpu_custom_call.1} parent=0
    #allocation5 [shape = 'u8[65536]{0}', space=vmem, size = 0x10000, scoped, tag = 'input window, operand 1, single buffered']
    #allocation6 [shape = 's32[1]{0}', space=sflag, size = 0x4, scoped, tag = 'scoped memory for tpu_custom_call.1']
    #allocation7 [shape = 's32[1]{0}', space=sflag, size = 0x4, scoped, tag = 'scoped memory for tpu_custom_call.1']
    #allocation8 [shape = 'u8[65536]{0}', space=vmem, size = 0x10000, scoped, tag = 'input window, operand 3, single buffered']
    #allocation9 [shape = 's32[1]{0}', space=sflag, size = 0x4, scoped, tag = 'scoped memory for tpu_custom_call.1']
    #allocation10 [shape = 'u8[4096]{0}', space=vmem, size = 0x1000, scoped, tag = 'output window, operand 0, single buffered']
    %14 = vsyncpa [#allocation6], 0
    %15 = vsyncpa [#allocation9], 0
    %16 = vsyncpa [#allocation7], 0
    // Predicated region
    $region2: #{tpu_custom_call.1} parent=1 // pred_check
      _
    $region3: #{tpu_custom_call.1} parent=1 // pred_check_branch
      %18 = sbr.rel (0) target = $region5
    $region4: #{tpu_custom_call.1} parent=1 // pred_region
      %s20 = ssub.s32 2048, 2048
      %21 = vsyncadd [#allocation6], %s20
      %s22 = sshll.u32 [#allocation5], 4
      %s23 = int_to_ptr.vmem [resolvable:$true] %s22
      %28 = dma.hbm_to_vmem [thread:$0]  %s1, 2048, %s23, [#allocation6], 128, 128, 8
    $region5: #{tpu_custom_call.1} parent=1 // pred_fallthru
      _
    // Predicated region
    $region6: #{tpu_custom_call.1} parent=1 // pred_check
      _
    $region7: #{tpu_custom_call.1} parent=1 // pred_check_branch
      %30 = sbr.rel (0) target = $region9
    $region8: #{tpu_custom_call.1} parent=1 // pred_region
      _
    $region9: #{tpu_custom_call.1} parent=1 // pred_fallthru
      _
    // Predicated region
    $region10: #{tpu_custom_call.1} parent=1 // pred_check
      _
    $region11: #{tpu_custom_call.1} parent=1 // pred_check_branch
      %32 = sbr.rel (0) target = $region13
    $region12: #{tpu_custom_call.1} parent=1 // pred_region
      %s34 = ssub.s32 2048, 2048
      %35 = vsyncadd [#allocation9], %s34
      %s36 = sshll.u32 [#allocation8], 4
      %s37 = int_to_ptr.vmem [resolvable:$true] %s36
      %42 = dma.hbm_to_vmem [thread:$0]  %s3, 2048, %s37, [#allocation9], 128, 128, 8
    $region13: #{tpu_custom_call.1} parent=1 // pred_fallthru
      _
    // Predicated region
    $region14: #{tpu_custom_call.1} parent=1 // pred_check
      _
    $region15: #{tpu_custom_call.1} parent=1 // pred_check_branch
      %44 = sbr.rel (0) target = $region17
    $region16: #{tpu_custom_call.1} parent=1 // pred_region
      _
    $region17: #{tpu_custom_call.1} parent=1 // pred_fallthru
      _
    // Predicated region
    $region18: #{tpu_custom_call.1} parent=1 // pred_check
      _
    $region19: #{tpu_custom_call.1} parent=1 // pred_check_branch
      %46 = sbr.rel (0) target = $region21
    $region20: #{tpu_custom_call.1} parent=1 // pred_region
      %47 = dma.done [#allocation6], 2048
    $region21: #{tpu_custom_call.1} parent=1 // pred_fallthru
      _
    // Predicated region
    $region22: #{tpu_custom_call.1} parent=1 // pred_check
      _
    $region23: #{tpu_custom_call.1} parent=1 // pred_check_branch
      %49 = sbr.rel (0) target = $region25
    $region24: #{tpu_custom_call.1} parent=1 // pred_region
      %50 = dma.done [#allocation9], 2048
    $region25: #{tpu_custom_call.1} parent=1 // pred_fallthru
      _
    %s51 = smul.u32 0, 8
    %v52 = vld [vmem:[%s2] sm:$0x1]
    %s53 = sld [smem:[#allocation4 + %s51]]
    %s54 = scalar_lea.vmem [#allocation5], %s53
    %v55 = vld [vmem:[%s54] sm:$0x1]
    %v56 = vadd.f32 %v52, %v55
    %s57 = sshra.s32 %s51, 7
    %s58 = sand.u32 %s51, 127
    %s59 = sadd.s32 %s57, 1
    %s60 = smul.u32 %s59, 128
    %s61 = sshra.s32 %s51, 7
    %s62 = sand.u32 %s51, 127
    %s63 = sadd.s32 %s60, %s62
    %s64 = sld [smem:[#allocation4 + %s63]]
    %s65 = sadd.s32 %s64, 64
    %s66 = scalar_lea.vmem [#allocation5], %s65
    %v67 = vld [vmem:[%s66] sm:$0x1]
    %v68 = vadd.f32 %v56, %v67
    %69 = vst [vmem:[#allocation2] sm:$0x1] %v68
    %s70 = sadd.s32 %s51, 1
    %s71 = sld [smem:[#allocation4 + %s70]]
    %s72 = scalar_lea.vmem [#allocation5], %s71
    %v73 = vld [vmem:[%s72] sm:$0x1]
    %v74 = vadd.f32 %v52, %v73
    %s75 = sshra.s32 %s70, 7
    %s76 = sand.u32 %s70, 127
    %s77 = sadd.s32 %s75, 1
    %s78 = smul.u32 %s77, 128
    %s79 = sshra.s32 %s70, 7
    %s80 = sand.u32 %s70, 127
    %s81 = sadd.s32 %s78, %s80
    %s82 = sld [smem:[#allocation4 + %s81]]
    %s83 = sadd.s32 %s82, 64
    %s84 = scalar_lea.vmem [#allocation5], %s83
    %v85 = vld [vmem:[%s84] sm:$0x1]
    %v86 = vadd.f32 %v74, %v85
    %87 = vst [vmem:[#allocation2 + $0x1] sm:$0x1] %v86
    %s88 = sadd.s32 %s51, 2
    %s89 = sld [smem:[#allocation4 + %s88]]
    %s90 = scalar_lea.vmem [#allocation5], %s89
    %v91 = vld [vmem:[%s90] sm:$0x1]
    %v92 = vadd.f32 %v52, %v91
    %s93 = sshra.s32 %s88, 7
    %s94 = sand.u32 %s88, 127
    %s95 = sadd.s32 %s93, 1
    %s96 = smul.u32 %s95, 128
    %s97 = sshra.s32 %s88, 7
    %s98 = sand.u32 %s88, 127
    %s99 = sadd.s32 %s96, %s98
    %s100 = sld [smem:[#allocation4 + %s99]]
    %s101 = sadd.s32 %s100, 64
    %s102 = scalar_lea.vmem [#allocation5], %s101
    %v103 = vld [vmem:[%s102] sm:$0x1]
    %v104 = vadd.f32 %v92, %v103
    %105 = vst [vmem:[#allocation2 + $0x2] sm:$0x1] %v104
    %s106 = sadd.s32 %s51, 3
    %s107 = sld [smem:[#allocation4 + %s106]]
    %s108 = scalar_lea.vmem [#allocation5], %s107
    %v109 = vld [vmem:[%s108] sm:$0x1]
    %v110 = vadd.f32 %v52, %v109
    %s111 = sshra.s32 %s106, 7
    %s112 = sand.u32 %s106, 127
    %s113 = sadd.s32 %s111, 1
    %s114 = smul.u32 %s113, 128
    %s115 = sshra.s32 %s106, 7
    %s116 = sand.u32 %s106, 127
    %s117 = sadd.s32 %s114, %s116
    %s118 = sld [smem:[#allocation4 + %s117]]
    %s119 = sadd.s32 %s118, 64
    %s120 = scalar_lea.vmem [#allocation5], %s119
    %v121 = vld [vmem:[%s120] sm:$0x1]
    %v122 = vadd.f32 %v110, %v121
    %123 = vst [vmem:[#allocation2 + $0x3] sm:$0x1] %v122
    %s124 = sadd.s32 %s51, 4
    %s125 = sld [smem:[#allocation4 + %s124]]
    %s126 = scalar_lea.vmem [#allocation5], %s125
    %v127 = vld [vmem:[%s126] sm:$0x1]
    %v128 = vadd.f32 %v52, %v127
    %s129 = sshra.s32 %s124, 7
    %s130 = sand.u32 %s124, 127
    %s131 = sadd.s32 %s129, 1
    %s132 = smul.u32 %s131, 128
    %s133 = sshra.s32 %s124, 7
    %s134 = sand.u32 %s124, 127
    %s135 = sadd.s32 %s132, %s134
    %s136 = sld [smem:[#allocation4 + %s135]]
    %s137 = sadd.s32 %s136, 64
    %s138 = scalar_lea.vmem [#allocation5], %s137
    %v139 = vld [vmem:[%s138] sm:$0x1]
    %v140 = vadd.f32 %v128, %v139
    %141 = vst [vmem:[#allocation2 + $0x4] sm:$0x1] %v140
    %s142 = sadd.s32 %s51, 5
    %s143 = sld [smem:[#allocation4 + %s142]]
    %s144 = scalar_lea.vmem [#allocation5], %s143
    %v145 = vld [vmem:[%s144] sm:$0x1]
    %v146 = vadd.f32 %v52, %v145
    %s147 = sshra.s32 %s142, 7
    %s148 = sand.u32 %s142, 127
    %s149 = sadd.s32 %s147, 1
    %s150 = smul.u32 %s149, 128
    %s151 = sshra.s32 %s142, 7
    %s152 = sand.u32 %s142, 127
    %s153 = sadd.s32 %s150, %s152
    %s154 = sld [smem:[#allocation4 + %s153]]
    %s155 = sadd.s32 %s154, 64
    %s156 = scalar_lea.vmem [#allocation5], %s155
    %v157 = vld [vmem:[%s156] sm:$0x1]
    %v158 = vadd.f32 %v146, %v157
    %159 = vst [vmem:[#allocation2 + $0x5] sm:$0x1] %v158
    %s160 = sadd.s32 %s51, 6
    %s161 = sld [smem:[#allocation4 + %s160]]
    %s162 = scalar_lea.vmem [#allocation5], %s161
    %v163 = vld [vmem:[%s162] sm:$0x1]
    %v164 = vadd.f32 %v52, %v163
    %s165 = sshra.s32 %s160, 7
    %s166 = sand.u32 %s160, 127
    %s167 = sadd.s32 %s165, 1
    %s168 = smul.u32 %s167, 128
    %s169 = sshra.s32 %s160, 7
    %s170 = sand.u32 %s160, 127
    %s171 = sadd.s32 %s168, %s170
    %s172 = sld [smem:[#allocation4 + %s171]]
    %s173 = sadd.s32 %s172, 64
    %s174 = scalar_lea.vmem [#allocation5], %s173
    %v175 = vld [vmem:[%s174] sm:$0x1]
    %v176 = vadd.f32 %v164, %v175
    %177 = vst [vmem:[#allocation2 + $0x6] sm:$0x1] %v176
    %s178 = sadd.s32 %s51, 7
    %s179 = sld [smem:[#allocation4 + %s178]]
    %s180 = scalar_lea.vmem [#allocation5], %s179
    %v181 = vld [vmem:[%s180] sm:$0x1]
    %v182 = vadd.f32 %v52, %v181
    %s183 = sshra.s32 %s178, 7
    %s184 = sand.u32 %s178, 127
    %s185 = sadd.s32 %s183, 1
    %s186 = smul.u32 %s185, 128
    %s187 = sshra.s32 %s178, 7
    %s188 = sand.u32 %s178, 127
    %s189 = sadd.s32 %s186, %s188
    %s190 = sld [smem:[#allocation4 + %s189]]
    %s191 = sadd.s32 %s190, 64
    %s192 = scalar_lea.vmem [#allocation5], %s191
    %v193 = vld [vmem:[%s192] sm:$0x1]
    %v194 = vadd.f32 %v182, %v193
    %195 = vst [vmem:[#allocation2 + $0x7] sm:$0x1] %v194
    %v196 = vld [vmem:[#allocation2] sm:$0xff]
    %v197 = vtanh.pop %v196
    %v198 = vld [vmem:[#allocation8] sm:$0xff]
    %v199 = vld [vmem:[#allocation8 + $0x8] sm:$0xff]
    %v200 = vld [vmem:[#allocation8 + $0x10] sm:$0xff]
    %v201 = vld [vmem:[#allocation8 + $0x18] sm:$0xff]
    %v202 = vld [vmem:[#allocation8 + $0x20] sm:$0xff]
    %v203 = vld [vmem:[#allocation8 + $0x28] sm:$0xff]
    %v204 = vld [vmem:[#allocation8 + $0x30] sm:$0xff]
    %v205 = vld [vmem:[#allocation8 + $0x38] sm:$0xff]
    %v206 = vld [vmem:[#allocation8 + $0x40] sm:$0xff]
    %v207 = vld [vmem:[#allocation8 + $0x48] sm:$0xff]
    %v208 = vld [vmem:[#allocation8 + $0x50] sm:$0xff]
    %v209 = vld [vmem:[#allocation8 + $0x58] sm:$0xff]
    %v210 = vld [vmem:[#allocation8 + $0x60] sm:$0xff]
    %v211 = vld [vmem:[#allocation8 + $0x68] sm:$0xff]
    %v212 = vld [vmem:[#allocation8 + $0x70] sm:$0xff]
    %v213 = vld [vmem:[#allocation8 + $0x78] sm:$0xff]
    %v214 = vld [vmem:[%s4] sm:$0x1]
    %v216 = vlaneseq
    %v217 = vshrl.u32 %v216, 7
    %v218 = vsub.s32 0, %v217
    %v219 = vrot.slane %v214, %v218
    %221 = vmatprep.subr.mxu0 0.0
    %222 = vmatpush1.msra.mxu0 %v198
    %223 = vmatprep.subr.mxu0 0.0
    %224 = vmatpush1.msra.mxu0 %v199
    %225 = vmatprep.subr.mxu0 0.0
    %226 = vmatpush1.msra.mxu0 %v200
    %227 = vmatprep.subr.mxu0 0.0
    %228 = vmatpush1.msra.mxu0 %v201
    %229 = vmatprep.subr.mxu0 0.0
    %230 = vmatpush1.msra.mxu0 %v202
    %231 = vmatprep.subr.mxu0 0.0
    %232 = vmatpush1.msra.mxu0 %v203
    %233 = vmatprep.subr.mxu0 0.0
    %234 = vmatpush1.msra.mxu0 %v204
    %235 = vmatprep.subr.mxu0 0.0
    %236 = vmatpush1.msra.mxu0 %v205
    %237 = vmatprep.subr.mxu0 0.0
    %238 = vmatpush1.msra.mxu0 %v206
    %239 = vmatprep.subr.mxu0 0.0
    %240 = vmatpush1.msra.mxu0 %v207
    %241 = vmatprep.subr.mxu0 0.0
    %242 = vmatpush1.msra.mxu0 %v208
    %243 = vmatprep.subr.mxu0 0.0
    %244 = vmatpush1.msra.mxu0 %v209
    %245 = vmatprep.subr.mxu0 0.0
    %246 = vmatpush1.msra.mxu0 %v210
    %247 = vmatprep.subr.mxu0 0.0
    %248 = vmatpush1.msra.mxu0 %v211
    %249 = vmatprep.subr.mxu0 0.0
    %250 = vmatpush1.msra.mxu0 %v212
    %251 = vmatprep.subr.mxu0 0.0
    %252 = vmatpush1.msra.mxu0 %v213
    %253 = vmatprep.subr.mxu0 0.0
    %254 = vmatpush1.msra.mxu0 0.0
    %255 = vmatprep.subr.mxu0 0.0
    %256 = vmatpush1.msra.mxu0 0.0
    %257 = vmatprep.subr.mxu0 0.0
    %258 = vmatpush1.msra.mxu0 0.0
    %259 = vmatprep.subr.mxu0 0.0
    %260 = vmatpush1.msra.mxu0 0.0
    %261 = vmatprep.subr.mxu0 0.0
    %262 = vmatpush1.msra.mxu0 0.0
    %263 = vmatprep.subr.mxu0 0.0
    %264 = vmatpush1.msra.mxu0 0.0
    %265 = vmatprep.subr.mxu0 0.0
    %266 = vmatpush1.msra.mxu0 0.0
    %267 = vmatprep.subr.mxu0 0.0
    %268 = vmatpush1.msra.mxu0 0.0
    %269 = vmatprep.subr.mxu0 0.0
    %270 = vmatpush1.msra.mxu0 0.0
    %271 = vmatprep.subr.mxu0 0.0
    %272 = vmatpush1.msra.mxu0 0.0
    %273 = vmatprep.subr.mxu0 0.0
    %274 = vmatpush1.msra.mxu0 0.0
    %275 = vmatprep.subr.mxu0 0.0
    %276 = vmatpush1.msra.mxu0 0.0
    %277 = vmatprep.subr.mxu0 0.0
    %278 = vmatpush1.msra.mxu0 0.0
    %279 = vmatprep.subr.mxu0 0.0
    %280 = vmatpush1.msra.mxu0 0.0
    %281 = vmatprep.subr.mxu0 0.0
    %282 = vmatpush1.msra.mxu0 0.0
    %283 = vmatprep.subr.mxu0 0.0
    %284 = vmatpush1.msra.mxu0 0.0
    %285 = vmatprep.mubr.f32.mxu0 0.0
    %286 = vmatmul.mubr.f32.gmra.mrb[0].mxu0 %v197
    %v287 = vpop.f32.mrb[0].mxu0
    %v288 = vadd.f32 %v219, %v287
    %v289 = vpop.f32.mrb[0].mxu0
    %290 = vdwg.mxu0
    %v291 = vlaneseq
    %v292 = vand.u32 %v291, 127
    %vm293 = vcmp.lt.s32.totalorder %v292, 64
    %v294 = vsel %vm293, %v288, -1e+30
    %295 = vmax.xlane.f32.xlu0 %v294
    %v296 = vpop.xlane.xlu0 %295
    %v297 = vsub.f32 %v294, %v296
    %v298 = vmul.f32 %v297, 1.442695
    %v299 = vpow.pop %v298
    %300 = vadd.xlane.f32.xlu0 %v299
    %v301 = vpop.xlane.xlu0 %300
    %v302 = vlog2.pop %v301
    %v303 = vmul.f32 %v302, 0.6931472
    %v304 = vsub.f32 %v297, %v303
    %305 = vst [vmem:[#allocation10] sm:$0xff] %v304
    // Predicated region
    $region26: #{tpu_custom_call.1} parent=1 // pred_check
      _
    $region27: #{tpu_custom_call.1} parent=1 // pred_check_branch
      %307 = sbr.rel (0) target = $region29
    $region28: #{tpu_custom_call.1} parent=1 // pred_region
      %s309 = ssub.s32 128, 128
      %310 = vsyncadd [#allocation7], %s309
      %s312 = sshll.u32 [#allocation10], 4
      %s313 = int_to_ptr.vmem [resolvable:$true] %s312
      %315 = dma.vmem_to_hbm [thread:$0]  %s313, 128, %s5, [#allocation7]
    $region29: #{tpu_custom_call.1} parent=1 // pred_fallthru
      _
    // Predicated region
    $region30: #{tpu_custom_call.1} parent=1 // pred_check
      _
    $region31: #{tpu_custom_call.1} parent=1 // pred_check_branch
      %317 = sbr.rel (0) target = $region33
    $region32: #{tpu_custom_call.1} parent=1 // pred_region
      %318 = dma.done [#allocation7], 128
    $region33: #{tpu_custom_call.1} parent=1 // pred_fallthru
      _
    %319 = vsyncpa [#allocation6], 1
    %320 = vsyncpa [#allocation9], 1
    %321 = vsyncpa [#allocation7], 1

</llo_original>
